<compile_context>
chip_gen: v5e
topology: v5e:2x2
jax: 0.10.0
libtpu: 0.0.40
codegen_flags: <defaults>
</compile_context>

<pallas_src>
import jax
import jax.numpy as jnp
from jax import lax
from jax.experimental import pallas as pl
from jax.experimental.pallas import tpu as pltpu


def _rand_dropout_kernel(seed_ref, o_ref):
    tm, tl = o_ref.shape
    base_row = (pl.program_id(0) * tm).astype(jnp.uint32)

    # Global element index for every position of this tile (counter for the PRNG).
    row = lax.broadcasted_iota(jnp.uint32, (tm, tl), 0)
    col = lax.broadcasted_iota(jnp.uint32, (tm, tl), 1)
    idx = (base_row + row) * jnp.uint32(tl) + col

    seed = seed_ref[0].astype(jnp.uint32)
    h = idx + (seed + jnp.uint32(1)) * jnp.uint32(0x9E3779B9)

    # murmur3 fmix32 finalizer: cheap, all-VPU avalanche hash.
    h = h ^ (h >> jnp.uint32(16))
    h = h * jnp.uint32(0x85EBCA6B)
    h = h ^ (h >> jnp.uint32(13))
    h = h * jnp.uint32(0xC2B2AE35)
    h = h ^ (h >> jnp.uint32(16))

    # One random word per element, reused:
    #   bits 31:8 -> uniform [0,1) (exact in f32); dropout scale 2.0 folded in.
    #   bit 0     -> Bernoulli(0.5) keep mask (disjoint bits from the uniform).
    u24 = (h >> jnp.uint32(8)).astype(jnp.int32)          # < 2^24, exact signed convert
    val = u24.astype(jnp.float32) * jnp.float32(2.0 / (1 << 24))  # uniform * 2
    keep = (h & jnp.uint32(1)) != jnp.uint32(0)
    o_ref[...] = jnp.where(keep, val, jnp.float32(0.0)).astype(o_ref.dtype)


def model_forward(x, seed=0):
    """Pallas equivalent of Model.forward. x is NCHW; returns NCHW.

    Only x.shape / x.dtype are used (matching the PyTorch module, whose first
    dropout result is overwritten by rand_like) — so x is NOT passed to the
    kernel and no input HBM->VMEM DMA is generated.
    """
    n, c, h, w = x.shape
    m, l = n * c, h * w                     # lane-dense 2D view: (rows, lanes)

    # Pick a row-tile so one (double-buffered) output block stays well under
    # scoped VMEM on all generations (v5e 16 MiB .. v7x 32 MiB scoped).
    itemsize = jnp.dtype(x.dtype).itemsize
    target_bytes = 4 * 1024 * 1024          # ~4 MiB per output block
    tm = max(1, target_bytes // (l * itemsize))
    if tm >= m:
        tm = m                              # full dim -> always a legal block
    else:
        tm = max(8, (tm // 8) * 8)          # keep sublane dim a multiple of 8

    grid = (pl.cdiv(m, tm),)
    seed_arr = jnp.array([seed], dtype=jnp.int32)

    out2 = pl.pallas_call(
        _rand_dropout_kernel,
        out_shape=jax.ShapeDtypeStruct((m, l), x.dtype),
        grid=grid,
        in_specs=[pl.BlockSpec(memory_space=pltpu.MemorySpace.SMEM)],  # seed scalar
        out_specs=pl.BlockSpec((tm, l), lambda i: (i, 0)),
        compiler_params=pltpu.CompilerParams(
            dimension_semantics=("parallel",)),  # shard tiles across v7x cores
    )(seed_arr)

    return out2.reshape(n, c, h, w)


if __name__ == "__main__":
    key = jax.random.PRNGKey(0)
    # Small shape consistent with the module's elementwise forward (NCHW).
    x = jax.random.normal(key, (2, 4, 16, 16), dtype=jnp.float32)

    y = model_forward(x, seed=0)
    y = jax.block_until_ready(y)

    # Sanity checks on the semantics (uniform*2 with ~50% zeros).
    assert y.shape == x.shape and y.dtype == x.dtype
    assert float(jnp.min(y)) >= 0.0 and float(jnp.max(y)) < 2.0
    zero_frac = float(jnp.mean(y == 0.0))
    assert 0.3 < zero_frac < 0.7, f"unexpected zero fraction {zero_frac}"

    print("KERNEL_OK")
</pallas_src>

<mosaic_0001>
module attributes {stable_mosaic.version = 11 : i64} {
  func.func @_rand_dropout_kernel(%arg0: i32, %arg1: memref<1xi32, #tpu.memory_space<smem>>, %arg2: memref<8x256xf32, #tpu.memory_space<vmem>>) attributes {dimension_semantics = [#tpu.dimension_semantics<parallel>], iteration_bounds = array<i64: 1>, scalar_prefetch = 0 : i64, scratch_operands = 0 : i64, tpu.core_type = #tpu.core_type<tc>, window_params = [{transform_indices = @transform_0, window_bounds = array<i64: 1>}, {transform_indices = @transform_1, window_bounds = array<i64: 8, 256>}]} {
    %c8_i32 = arith.constant 8 : i32
    %0 = arith.muli %arg0, %c8_i32 : i32
    %1 = tpu.iota {dimensions = array<i32: 0>} : vector<8x256xi32>
    %2 = tpu.iota {dimensions = array<i32: 1>} : vector<8x256xi32>
    %3 = vector.broadcast %0 : i32 to vector<8x256xi32>
    %4 = arith.addi %3, %1 : vector<8x256xi32>
    %c256_i32 = arith.constant 256 : i32
    %5 = vector.broadcast %c256_i32 : i32 to vector<8x256xi32>
    %6 = arith.muli %4, %5 : vector<8x256xi32>
    %7 = arith.addi %6, %2 : vector<8x256xi32>
    %c0 = arith.constant 0 : index
    %8 = memref.load %arg1[%c0] : memref<1xi32, #tpu.memory_space<smem>>
    %c1_i32 = arith.constant 1 : i32
    %9 = arith.addi %8, %c1_i32 : i32
    %c-1640531527_i32 = arith.constant -1640531527 : i32
    %10 = arith.muli %9, %c-1640531527_i32 : i32
    %11 = vector.broadcast %10 : i32 to vector<8x256xi32>
    %12 = arith.addi %7, %11 : vector<8x256xi32>
    %c16_i32 = arith.constant 16 : i32
    %13 = vector.broadcast %c16_i32 : i32 to vector<8x256xi32>
    %14 = arith.shrui %12, %13 : vector<8x256xi32>
    %15 = arith.xori %12, %14 : vector<8x256xi32>
    %c-2048144789_i32 = arith.constant -2048144789 : i32
    %16 = vector.broadcast %c-2048144789_i32 : i32 to vector<8x256xi32>
    %17 = arith.muli %15, %16 : vector<8x256xi32>
    %c13_i32 = arith.constant 13 : i32
    %18 = vector.broadcast %c13_i32 : i32 to vector<8x256xi32>
    %19 = arith.shrui %17, %18 : vector<8x256xi32>
    %20 = arith.xori %17, %19 : vector<8x256xi32>
    %c-1028477387_i32 = arith.constant -1028477387 : i32
    %21 = vector.broadcast %c-1028477387_i32 : i32 to vector<8x256xi32>
    %22 = arith.muli %20, %21 : vector<8x256xi32>
    %c16_i32_0 = arith.constant 16 : i32
    %23 = vector.broadcast %c16_i32_0 : i32 to vector<8x256xi32>
    %24 = arith.shrui %22, %23 : vector<8x256xi32>
    %25 = arith.xori %22, %24 : vector<8x256xi32>
    %c8_i32_1 = arith.constant 8 : i32
    %26 = vector.broadcast %c8_i32_1 : i32 to vector<8x256xi32>
    %27 = arith.shrui %25, %26 : vector<8x256xi32>
    %28 = arith.sitofp %27 : vector<8x256xi32> to vector<8x256xf32>
    %cst = arith.constant 1.1920929E-7 : f32
    %29 = vector.broadcast %cst : f32 to vector<8x256xf32>
    %30 = arith.mulf %28, %29 : vector<8x256xf32>
    %c1_i32_2 = arith.constant 1 : i32
    %31 = vector.broadcast %c1_i32_2 : i32 to vector<8x256xi32>
    %32 = arith.andi %25, %31 : vector<8x256xi32>
    %c0_i32 = arith.constant 0 : i32
    %33 = vector.broadcast %c0_i32 : i32 to vector<8x256xi32>
    %34 = arith.cmpi ne, %32, %33 : vector<8x256xi32>
    %cst_3 = arith.constant 0.000000e+00 : f32
    %35 = vector.broadcast %cst_3 : f32 to vector<8x256xf32>
    %36 = arith.select %34, %30, %35 : vector<8x256xi1>, vector<8x256xf32>
    %c0_4 = arith.constant 0 : index
    %c0_5 = arith.constant 0 : index
    %37 = vector.load %arg2[%c0_4, %c0_5] : memref<8x256xf32, #tpu.memory_space<vmem>>, vector<8x256xf32>
    tpu.vector_store %arg2[%c0_4, %c0_5], %36 {strides = array<i32>} : memref<8x256xf32, #tpu.memory_space<vmem>>, vector<8x256xf32>,
    return
  }
  func.func @transform_0(%arg0: i32) -> i32 {
    %c0_i32 = arith.constant 0 : i32
    %c0_i32_0 = arith.constant 0 : i32
    return %c0_i32 : i32
  }
  func.func @transform_1(%arg0: i32) -> (i32, i32) {
    %c0_i32 = arith.constant 0 : i32
    %c0_i32_0 = arith.constant 0 : i32
    return %arg0, %c0_i32 : i32, i32
  }
}

</mosaic_0001>

<llo_original>
// kernel: tpu_custom_call.1
$region0: #{tpu_custom_call.1}
  #allocation0 [shape = 'u32[]', space=smem, size = 0x4, offset = 0x4, fixed_abs, tag = 'smem constant byte address 0x4 - core index']
  #allocation1 [shape = 'u32[72,128]{1,0:T(1,128)}', space=vmem, size = 0x9000, scoped, tag = 'internal scratch']
  #allocation2 [shape = 's32[1]{0:T(128)S(6)}', space=smem, size = 0x200, scoped, tag = 'scoped memory for tpu_custom_call.1']
  %s0 = inlined_call_operand.<no memory space> [shape: s32[1], index: 0, kind: input, shape index: {}]
  %s1 = inlined_call_operand.hbm [shape: f32[8,256], index: 1, kind: output, shape index: {}]
  %s2 = sld [smem:[#allocation0]]
  $region14: #{tpu_custom_call.1} parent=0
    _
  %s4 = ssub.s32 1, %s2
  %s5 = scalar_select 0, %s4, %s2
  %6 = sst [smem:[#allocation2]] %s0
  $region1: #{tpu_custom_call.1} parent=0
    #allocation3 [shape = 'u8[8192]{0}', space=vmem, size = 0x2000, scoped, tag = 'output window, operand 0, single buffered']
    #allocation4 [shape = 's32[1]{0}', space=sflag, size = 0x4, scoped, tag = 'scoped memory for tpu_custom_call.1']
    %7 = vsyncpa [#allocation4], 0
    // Predicated region
    $region2: #{tpu_custom_call.1} parent=1 // pred_check
      _
    $region3: #{tpu_custom_call.1} parent=1 // pred_check_branch
      %9 = sbr.rel (0) target = $region5
    $region4: #{tpu_custom_call.1} parent=1 // pred_region
      _
    $region5: #{tpu_custom_call.1} parent=1 // pred_fallthru
      _
    %s10 = smul.u32 0, 8
    %v11 = vlaneseq
    %v12 = vshrl.u32 %v11, 7
    %v13 = vlaneseq
    %v14 = vand.u32 %v13, 127
    %v15 = vadd.s32 %v14, 128
    %v16 = vstv %s10
    %v17 = vadd.s32 %v16, %v12
    %v18 = vmul.u32 %v17, 256
    %v19 = vadd.s32 %v18, %v14
    %v20 = vadd.s32 %v18, %v15
    %s21 = sld [smem:[#allocation2]]
    %s22 = sadd.s32 %s21, 1
    %s23 = smul.u32 %s22, 2654435769
    %v24 = vstv %s23
    %v25 = vadd.s32 %v19, %v24
    %v26 = vadd.s32 %v20, %v24
    %v27 = vshrl.u32 %v25, 16
    %v28 = vshrl.u32 %v26, 16
    %v29 = vxor.u32 %v25, %v27
    %v30 = vxor.u32 %v26, %v28
    %v31 = vmul.u32 %v29, 2246822507
    %v32 = vmul.u32 %v30, 2246822507
    %v33 = vshrl.u32 %v31, 13
    %v34 = vshrl.u32 %v32, 13
    %v35 = vxor.u32 %v31, %v33
    %v36 = vxor.u32 %v32, %v34
    %v37 = vmul.u32 %v35, 3266489909
    %v38 = vmul.u32 %v36, 3266489909
    %v39 = vshrl.u32 %v37, 16
    %v40 = vshrl.u32 %v38, 16
    %v41 = vxor.u32 %v37, %v39
    %v42 = vxor.u32 %v38, %v40
    %v43 = vshrl.u32 %v41, 8
    %v44 = vshrl.u32 %v42, 8
    %v45 = vcvt.s32.f32 %v43
    %v46 = vcvt.s32.f32 %v44
    %v47 = vmul.f32 %v45, 1.1920929e-07
    %v48 = vmul.f32 %v46, 1.1920929e-07
    %v49 = vand.u32 %v41, 1
    %v50 = vand.u32 %v42, 1
    %vm51 = vcmp.ne.s32.totalorder %v49, 0
    %vm52 = vcmp.ne.s32.totalorder %v50, 0
    %v53 = vsel %vm51, %v47, 0.0
    %v54 = vsel %vm52, %v48, 0.0
    %55 = vst [vmem:[#allocation3] sm:$0xff] %v53
    %56 = vst [vmem:[#allocation3 + $0x8] sm:$0xff] %v54
    // Predicated region
    $region6: #{tpu_custom_call.1} parent=1 // pred_check
      _
    $region7: #{tpu_custom_call.1} parent=1 // pred_check_branch
      %58 = sbr.rel (0) target = $region9
    $region8: #{tpu_custom_call.1} parent=1 // pred_region
      %60 = vsyncadd [#allocation4], 0
      %s62 = sshll.u32 [#allocation3], 4
      %s63 = int_to_ptr.vmem [resolvable:$true] %s62
      %s64 = sshll.u32 %s1, 4
      %s65 = int_to_ptr.hbm [resolvable:$true] %s64
      %67 = dma.vmem_to_hbm [thread:$0]  %s63, 256, %s65, [#allocation4]
    $region9: #{tpu_custom_call.1} parent=1 // pred_fallthru
      _
    // Predicated region
    $region10: #{tpu_custom_call.1} parent=1 // pred_check
      _
    $region11: #{tpu_custom_call.1} parent=1 // pred_check_branch
      %69 = sbr.rel (0) target = $region13
    $region12: #{tpu_custom_call.1} parent=1 // pred_region
      %71 = dma.done [#allocation4], 256
    $region13: #{tpu_custom_call.1} parent=1 // pred_fallthru
      _
    %72 = vsyncpa [#allocation4], 1

</llo_original>
